<compile_context>
chip_gen: v6e
topology: v6e:2x2x1
jax: 0.10.0
libtpu: 0.0.40
codegen_flags: <defaults>
</compile_context>

<pallas_src>
import functools

import jax
import jax.numpy as jnp
from jax.experimental import pallas as pl
from jax.experimental.pallas import tpu as pltpu

_VMEM_LIMIT = 48 * 1024 * 1024      # <= v7x's 64 MiB/TC; overrides v5e's 16 MiB scoped default
_STATS_TARGET = 8 * 1024 * 1024     # per-block budget for the stats pass (single x stream)
_APPLY_TARGET = 12 * 1024 * 1024    # combined x-in + y-out block budget for the apply pass


def _cdiv(a, b):
    return (a + b - 1) // b


def _plan_blocks(n, c, hw, target_bytes, x_streams, aux_f32_vecs):
    """Pick (samples-per-block Nb, lane tile T).

    T is either a multiple of 128 (tail handled by the cdiv grid + masking /
    masked writeback) or the full HW extent. When the full extent fits in the
    budget, several samples are packed per block to amortize the ~0.35 us
    per-grid-step overhead. Budgets are in f32-equivalent bytes (kernels compute
    in f32), which also keeps bf16 inputs' upcast temporaries safely inside VMEM.
    """
    lane_cap = (target_bytes // max(c * 4 * x_streams, 1)) // 128 * 128
    lane_cap = max(128, lane_cap)
    if hw > lane_cap:
        return 1, lane_cap
    # Whole spatial extent in one tile: batch samples. Account for lane padding
    # (min 128 lanes) and the per-sample f32 aux blocks (stats outs / scale+shift).
    per_sample = c * (max(hw, 128) * 4 * x_streams + aux_f32_vecs * 128 * 4)
    nb = int(max(1, min(n, target_bytes // max(per_sample, 1))))
    return nb, hw


def _stats_kernel(x_ref, sum_ref, sumsq_ref, *, hw, tile, kh, needs_mask):
    """Accumulate raw per-(n, c) sum / sum-of-squares over the HW tiles of one
    (sample-block, spatial-shard). Finalization (mean / unbiased variance) happens
    in the O(N*C) glue so the two spatial shards can run on separate TensorCores."""
    k = pl.program_id(2)

    @pl.when(k == 0)
    def _():
        sum_ref[...] = jnp.zeros_like(sum_ref)
        sumsq_ref[...] = jnp.zeros_like(sumsq_ref)

    x = x_ref[...].astype(jnp.float32)                     # (Nb, C, T) f32 on the vreg
    if needs_mask:
        s = pl.program_id(1)
        start = (s * kh + k) * tile                        # un-clamped element offset
        rem = hw - start                                   # <= 0 for overshoot tiles
        lane = jax.lax.broadcasted_iota(jnp.int32, x.shape, 2)
        x = jnp.where(lane < rem, x, jnp.float32(0.0))
    # C stays on the sublane axis: lane reduce + add, no per-step relayout.
    sum_ref[...] += jnp.sum(x, axis=-1, keepdims=True)
    sumsq_ref[...] += jnp.sum(x * x, axis=-1, keepdims=True)


def _apply_kernel(x_ref, scale_ref, shift_ref, o_ref):
    """Elementwise normalize + affine: y = x * scale + shift (f32 math, native I/O)."""
    x = x_ref[...].astype(jnp.float32)                     # (Nb, C, T)
    o_ref[...] = (x * scale_ref[...] + shift_ref[...]).astype(o_ref.dtype)


def optimized_norm2d(x, weight, bias, mean_weight, var_weight,
                     running_mean, running_var,
                     eps=1e-5, momentum=0.9, training=True,
                     using_moving_average=True):
    """Forward pass of OptimizedNorm2d_ch (modes=['in','bn'], channelwise or not).

    Returns (y, new_running_mean, new_running_var); the PyTorch module's in-place
    running-stat buffer updates are returned functionally instead.
    """
    N, C, H, W = x.shape
    HW = H * W
    x3 = x.reshape(N, C, HW)                               # native dtype, no upcast copy

    # ---- Pallas pass 1: raw spatial sum / sum-of-squares (tiled, masked tail) ----
    nb_s, t_s = _plan_blocks(N, C, HW, _STATS_TARGET, x_streams=1, aux_f32_vecs=2)
    kt = _cdiv(HW, t_s)                                    # total lane tiles
    S = 2 if kt >= 2 else 1                                # spatial shards (v7x dual-TC)
    kh = _cdiv(kt, S)
    needs_mask = (S * kh * t_s) != HW

    if S * kh > kt:
        # Odd tile count: the last shard overshoots; clamp the DMA to the final valid
        # tile (its contribution is zeroed by the mask computed from the raw index).
        def x_map(n, s, k):
            return (n, 0, jnp.minimum(s * kh + k, kt - 1))
    else:
        def x_map(n, s, k):
            return (n, 0, s * kh + k)

    sums3, sqs3 = pl.pallas_call(
        functools.partial(_stats_kernel, hw=HW, tile=t_s, kh=kh, needs_mask=needs_mask),
        out_shape=(jax.ShapeDtypeStruct((N, C, S), jnp.float32),
                   jax.ShapeDtypeStruct((N, C, S), jnp.float32)),
        grid=(_cdiv(N, nb_s), S, kh),
        in_specs=[pl.BlockSpec((nb_s, C, t_s), x_map)],
        out_specs=(pl.BlockSpec((nb_s, C, 1), lambda n, s, k: (n, 0, s)),
                   pl.BlockSpec((nb_s, C, 1), lambda n, s, k: (n, 0, s))),
        compiler_params=pltpu.CompilerParams(
            dimension_semantics=("parallel", "parallel", "arbitrary"),
            vmem_limit_bytes=_VMEM_LIMIT),
    )(x3)

    # ---- tiny O(N*C) glue: finalize stats, batch stats, mixing, scale/shift ----
    sums = jnp.sum(sums3, axis=-1)                         # (N, C)
    sqs = jnp.sum(sqs3, axis=-1)                           # (N, C)
    mean_in = sums * jnp.float32(1.0 / HW)
    # Unbiased variance (torch .var() default). HW == 1 -> 0/0 = NaN, matching torch
    # (and jnp.maximum preserves the NaN). Clamp the E[x^2]-mean^2 cancellation to
    # >= 0 so rsqrt(var + eps) stays finite for near-constant channels / bf16 inputs.
    var_in = jnp.maximum((sqs - jnp.float32(HW) * mean_in * mean_in)
                         / jnp.float32(HW - 1), 0.0)

    temp = var_in + mean_in ** 2
    if training:
        mean_bn = jnp.mean(mean_in, axis=0, keepdims=True)                     # (1, C)
        var_bn = jnp.maximum(jnp.mean(temp, axis=0, keepdims=True) - mean_bn ** 2, 0.0)
        if using_moving_average:
            new_running_mean = running_mean * momentum + (1.0 - momentum) * mean_bn.reshape(-1)
            new_running_var = running_var * momentum + (1.0 - momentum) * var_bn.reshape(-1)
        else:
            new_running_mean = running_mean + mean_bn.reshape(-1)
            new_running_var = running_var + mean_bn.reshape(-1) ** 2 + var_bn.reshape(-1)
    else:
        mean_bn = running_mean.reshape(1, C).astype(jnp.float32)
        var_bn = running_var.reshape(1, C).astype(jnp.float32)
        new_running_mean, new_running_var = running_mean, running_var

    # modes = ['in', 'bn']; softmax over the mode dim. Broadcasting covers both the
    # channelwise (2, C) and non-channelwise (2,) mixing-weight shapes.
    mw = jax.nn.softmax(mean_weight.astype(jnp.float32), axis=0)
    vw = jax.nn.softmax(var_weight.astype(jnp.float32), axis=0)
    mean = mean_in * mw[0] + mean_bn * mw[1]                                   # (N, C)
    var = var_in * vw[0] + var_bn * vw[1]                                      # (N, C)

    inv_std = jax.lax.rsqrt(var + jnp.float32(eps))
    w = weight.astype(jnp.float32)[None, :]                                    # (1, C)
    b = bias.astype(jnp.float32)[None, :]
    scale = (w * inv_std)[:, :, None]                                          # (N, C, 1)
    shift = (b - mean * w * inv_std)[:, :, None]                               # (N, C, 1)

    # ---- Pallas pass 2: elementwise normalize + affine, native-dtype output ----
    nb_a, t_a = _plan_blocks(N, C, HW, _APPLY_TARGET, x_streams=2, aux_f32_vecs=2)
    y3 = pl.pallas_call(
        _apply_kernel,
        out_shape=jax.ShapeDtypeStruct((N, C, HW), x.dtype),
        grid=(_cdiv(N, nb_a), _cdiv(HW, t_a)),
        in_specs=[pl.BlockSpec((nb_a, C, t_a), lambda n, k: (n, 0, k)),
                  pl.BlockSpec((nb_a, C, 1), lambda n, k: (n, 0, 0)),
                  pl.BlockSpec((nb_a, C, 1), lambda n, k: (n, 0, 0))],
        out_specs=pl.BlockSpec((nb_a, C, t_a), lambda n, k: (n, 0, k)),
        compiler_params=pltpu.CompilerParams(
            dimension_semantics=("parallel", "parallel"),
            vmem_limit_bytes=_VMEM_LIMIT),
    )(x3, scale, shift)

    return y3.reshape(N, C, H, W), new_running_mean, new_running_var


def _reference(x, weight, bias, mean_weight, var_weight, running_mean, running_var,
               eps=1e-5, momentum=0.9):
    """Pure-JAX port of the PyTorch forward (training branch) for verification."""
    N, C, H, W = x.shape
    xr = x.reshape(N, C, -1).astype(jnp.float32)
    mean_in = jnp.mean(xr, axis=-1, keepdims=True)
    var_in = jnp.var(xr, axis=-1, keepdims=True, ddof=1)   # torch .var() is unbiased
    temp = var_in + mean_in ** 2
    mean_bn = jnp.mean(mean_in, axis=0, keepdims=True)
    var_bn = jnp.mean(temp, axis=0, keepdims=True) - mean_bn ** 2
    rm = running_mean * momentum + (1.0 - momentum) * mean_bn.reshape(-1)
    rv = running_var * momentum + (1.0 - momentum) * var_bn.reshape(-1)
    mw = jax.nn.softmax(mean_weight, axis=0)               # (2, C) channelwise
    vw = jax.nn.softmax(var_weight, axis=0)
    mean = mean_in * mw[0].reshape(1, -1, 1) + mean_bn * mw[1].reshape(1, -1, 1)
    var = var_in * vw[0].reshape(1, -1, 1) + var_bn * vw[1].reshape(1, -1, 1)
    xn = (xr - mean) / jnp.sqrt(var + eps)
    xn = xn.reshape(N, C, H, W)
    y = xn * weight.reshape(1, C, 1, 1) + bias.reshape(1, C, 1, 1)
    return y, rm, rv


if __name__ == "__main__":
    key = jax.random.PRNGKey(0)
    N, C, H, W = 2, 4, 16, 16
    k1, k2, k3, k4, k5 = jax.random.split(key, 5)

    x = jax.random.normal(k1, (N, C, H, W), jnp.float32)

    # OptimizedNorm2d_ch defaults: channelwise=True, modes=['in','bn'] =>
    # mean_weight / var_weight have shape (2, C). Perturbed from the ones-init.
    weight = jnp.ones((C,), jnp.float32) + 0.1 * jax.random.normal(k2, (C,), jnp.float32)
    bias = 0.1 * jax.random.normal(k3, (C,), jnp.float32)
    mean_weight = jnp.ones((2, C), jnp.float32) + 0.1 * jax.random.normal(k4, (2, C), jnp.float32)
    var_weight = jnp.ones((2, C), jnp.float32) + 0.1 * jax.random.normal(k5, (2, C), jnp.float32)
    running_mean = jnp.zeros((C,), jnp.float32)
    running_var = jnp.zeros((C,), jnp.float32)

    # f32 path (matches PyTorch default dtype)
    y, rm, rv = optimized_norm2d(x, weight, bias, mean_weight, var_weight,
                                 running_mean, running_var)
    jax.block_until_ready(y)

    y_ref, rm_ref, rv_ref = _reference(x, weight, bias, mean_weight, var_weight,
                                       running_mean, running_var)
    assert y.dtype == x.dtype
    assert jnp.allclose(y, y_ref, atol=1e-4, rtol=1e-4), "output mismatch (f32)"
    assert jnp.allclose(rm, rm_ref, atol=1e-5), "running_mean mismatch"
    assert jnp.allclose(rv, rv_ref, atol=1e-5), "running_var mismatch"

    # bf16 path: native-dtype HBM I/O, f32 accumulation inside the kernels.
    xb = x.astype(jnp.bfloat16)
    yb, _, _ = optimized_norm2d(xb, weight, bias, mean_weight, var_weight,
                                running_mean, running_var)
    jax.block_until_ready(yb)
    yb_ref, _, _ = _reference(xb.astype(jnp.float32), weight, bias, mean_weight,
                              var_weight, running_mean, running_var)
    assert yb.dtype == jnp.bfloat16
    assert jnp.allclose(yb.astype(jnp.float32), yb_ref, atol=5e-2, rtol=5e-2), \
        "output mismatch (bf16)"

    print("KERNEL_OK")
</pallas_src>

<mosaic_0001>
module attributes {stable_mosaic.version = 11 : i64} {
  func.func @_stats_kernel(%arg0: i32, %arg1: i32, %arg2: i32, %arg3: memref<2x4x256xf32, #tpu.memory_space<vmem>>, %arg4: memref<2x4x1xf32, #tpu.memory_space<vmem>>, %arg5: memref<2x4x1xf32, #tpu.memory_space<vmem>>) attributes {dimension_semantics = [#tpu.dimension_semantics<parallel>, #tpu.dimension_semantics<parallel>, #tpu.dimension_semantics<arbitrary>], iteration_bounds = array<i64: 1, 1, 1>, scalar_prefetch = 0 : i64, scratch_operands = 0 : i64, tpu.core_type = #tpu.core_type<tc>, window_params = [{transform_indices = @transform_0, window_bounds = array<i64: 2, 4, 256>}, {transform_indices = @transform_1, window_bounds = array<i64: 2, 4, 1>}, {transform_indices = @transform_2, window_bounds = array<i64: 2, 4, 1>}]} {
    %c0_i32 = arith.constant 0 : i32
    %0 = arith.cmpi eq, %arg2, %c0_i32 : i32
    %1 = arith.extui %0 : i1 to i32
    %c0_i32_0 = arith.constant 0 : i32
    %2 = arith.cmpi ne, %1, %c0_i32_0 : i32
    scf.if %2 {
      %cst_16 = arith.constant 0.000000e+00 : f32
      %15 = vector.broadcast %cst_16 : f32 to vector<2x4x1xf32>
      %c0_17 = arith.constant 0 : index
      %c0_18 = arith.constant 0 : index
      %c0_19 = arith.constant 0 : index
      %16 = vector.load %arg4[%c0_17, %c0_18, %c0_19] : memref<2x4x1xf32, #tpu.memory_space<vmem>>, vector<2x4x1xf32>
      tpu.vector_store %arg4[%c0_17, %c0_18, %c0_19], %15 {strides = array<i32>} : memref<2x4x1xf32, #tpu.memory_space<vmem>>, vector<2x4x1xf32>,
      %cst_20 = arith.constant 0.000000e+00 : f32
      %17 = vector.broadcast %cst_20 : f32 to vector<2x4x1xf32>
      %c0_21 = arith.constant 0 : index
      %c0_22 = arith.constant 0 : index
      %c0_23 = arith.constant 0 : index
      %18 = vector.load %arg5[%c0_21, %c0_22, %c0_23] : memref<2x4x1xf32, #tpu.memory_space<vmem>>, vector<2x4x1xf32>
      tpu.vector_store %arg5[%c0_21, %c0_22, %c0_23], %17 {strides = array<i32>} : memref<2x4x1xf32, #tpu.memory_space<vmem>>, vector<2x4x1xf32>,
    } else {
    }
    %c0 = arith.constant 0 : index
    %c0_1 = arith.constant 0 : index
    %c0_2 = arith.constant 0 : index
    %3 = vector.load %arg3[%c0, %c0_1, %c0_2] : memref<2x4x256xf32, #tpu.memory_space<vmem>>, vector<2x4x256xf32>
    %c0_3 = arith.constant 0 : index
    %c0_4 = arith.constant 0 : index
    %c0_5 = arith.constant 0 : index
    %4 = vector.load %arg4[%c0_3, %c0_4, %c0_5] : memref<2x4x1xf32, #tpu.memory_space<vmem>>, vector<2x4x1xf32>
    %cst = arith.constant dense<0.000000e+00> : vector<2x4xf32>
    %5 = vector.multi_reduction <add>, %3, %cst [2] : vector<2x4x256xf32> to vector<2x4xf32>
    %6 = vector.shape_cast %5 : vector<2x4xf32> to vector<2x4x1xf32>
    %7 = arith.addf %4, %6 : vector<2x4x1xf32>
    %c0_6 = arith.constant 0 : index
    %c0_7 = arith.constant 0 : index
    %c0_8 = arith.constant 0 : index
    %8 = vector.load %arg4[%c0_6, %c0_7, %c0_8] : memref<2x4x1xf32, #tpu.memory_space<vmem>>, vector<2x4x1xf32>
    tpu.vector_store %arg4[%c0_6, %c0_7, %c0_8], %7 {strides = array<i32>} : memref<2x4x1xf32, #tpu.memory_space<vmem>>, vector<2x4x1xf32>,
    %c0_9 = arith.constant 0 : index
    %c0_10 = arith.constant 0 : index
    %c0_11 = arith.constant 0 : index
    %9 = vector.load %arg5[%c0_9, %c0_10, %c0_11] : memref<2x4x1xf32, #tpu.memory_space<vmem>>, vector<2x4x1xf32>
    %10 = arith.mulf %3, %3 : vector<2x4x256xf32>
    %cst_12 = arith.constant dense<0.000000e+00> : vector<2x4xf32>
    %11 = vector.multi_reduction <add>, %10, %cst_12 [2] : vector<2x4x256xf32> to vector<2x4xf32>
    %12 = vector.shape_cast %11 : vector<2x4xf32> to vector<2x4x1xf32>
    %13 = arith.addf %9, %12 : vector<2x4x1xf32>
    %c0_13 = arith.constant 0 : index
    %c0_14 = arith.constant 0 : index
    %c0_15 = arith.constant 0 : index
    %14 = vector.load %arg5[%c0_13, %c0_14, %c0_15] : memref<2x4x1xf32, #tpu.memory_space<vmem>>, vector<2x4x1xf32>
    tpu.vector_store %arg5[%c0_13, %c0_14, %c0_15], %13 {strides = array<i32>} : memref<2x4x1xf32, #tpu.memory_space<vmem>>, vector<2x4x1xf32>,
    return
  }
  func.func @transform_0(%arg0: i32, %arg1: i32, %arg2: i32) -> (i32, i32, i32) {
    %c1_i32 = arith.constant 1 : i32
    %0 = arith.muli %arg1, %c1_i32 : i32
    %1 = arith.addi %0, %arg2 : i32
    %c0_i32 = arith.constant 0 : i32
    %c0_i32_0 = arith.constant 0 : i32
    return %arg0, %c0_i32, %1 : i32, i32, i32
  }
  func.func @transform_1(%arg0: i32, %arg1: i32, %arg2: i32) -> (i32, i32, i32) {
    %c0_i32 = arith.constant 0 : i32
    %c0_i32_0 = arith.constant 0 : i32
    return %arg0, %c0_i32, %arg1 : i32, i32, i32
  }
  func.func @transform_2(%arg0: i32, %arg1: i32, %arg2: i32) -> (i32, i32, i32) {
    %c0_i32 = arith.constant 0 : i32
    %c0_i32_0 = arith.constant 0 : i32
    return %arg0, %c0_i32, %arg1 : i32, i32, i32
  }
}

</mosaic_0001>

<llo_original>
// kernel: tpu_custom_call.1
$region0: #{tpu_custom_call.1}
  #allocation0 [shape = 'u32[]', space=smem, size = 0x4, offset = 0x4, fixed_abs, tag = 'smem constant byte address 0x4 - core index']
  #allocation1 [shape = 'u32[144,128]{1,0:T(1,128)}', space=vmem, size = 0x12000, scoped, tag = 'internal scratch']
  %s0 = inlined_call_operand.hbm [shape: f32[2,4,256], index: 0, kind: input, shape index: {}]
  %s1 = inlined_call_operand.vmem [shape: f32[2,4,1], index: 1, kind: output, shape index: {0}]
  %s2 = inlined_call_operand.vmem [shape: f32[2,4,1], index: 2, kind: output, shape index: {1}]
  %3 = xla_tuple %s1, %s2
  %s4 = sld [smem:[#allocation0]]
  $region30: #{tpu_custom_call.1} parent=0
    _
  %s6 = ssub.s32 1, %s4
  %s7 = scalar_select 0, %s6, %s4
  $region1: #{tpu_custom_call.1} parent=0
    #allocation2 [shape = 'u8[8192]{0}', space=vmem, size = 0x2000, scoped, tag = 'input window, operand 0, single buffered']
    #allocation3 [shape = 's32[1]{0}', space=sflag, size = 0x4, scoped, tag = 'scoped memory for tpu_custom_call.1']
    %8 = vsyncpa [#allocation3], 0
    // Predicated region
    $region2: #{tpu_custom_call.1} parent=1 // pred_check
      _
    $region3: #{tpu_custom_call.1} parent=1 // pred_check_branch
      %10 = sbr.rel (0) target = $region5
    $region4: #{tpu_custom_call.1} parent=1 // pred_region
      %s11 = sadd.s32 0, 0
      %s12 = smul.u32 2, %s11
      %s14 = ssub.s32 256, 256
      %15 = vsyncadd [#allocation3], %s14
      %s16 = smul.addr %s12, 64
      %s17 = scalar_lea.hbm %s0, %s16
      %s18 = sshll.u32 [#allocation2], 4
      %s19 = int_to_ptr.vmem [resolvable:$true] %s18
      %24 = dma.hbm_to_vmem [thread:$0]  %s17, 256, %s19, [#allocation3], 128, 128, 8
    $region5: #{tpu_custom_call.1} parent=1 // pred_fallthru
      _
    // Predicated region
    $region6: #{tpu_custom_call.1} parent=1 // pred_check
      _
    $region7: #{tpu_custom_call.1} parent=1 // pred_check_branch
      %26 = sbr.rel (0) target = $region9
    $region8: #{tpu_custom_call.1} parent=1 // pred_region
      %27 = dma.done [#allocation3], 256
    $region9: #{tpu_custom_call.1} parent=1 // pred_fallthru
      _
    %s28 = sadd.s32 0, 0
    %s29 = smul.u32 2, %s28
    %p30 = scmp.eq.s32.totalorder 0, 0
    // Predicated region
    $region10: #{tpu_custom_call.1} parent=1 // pred_check
      %p31 = pneg %p30
    $region11: #{tpu_custom_call.1} parent=1 // pred_check_branch
      %33 = sbr.rel (%p31) target = $region13
    $region12: #{tpu_custom_call.1} parent=1 // pred_region
      %vm34 = vcmask 3072
      %35 = vst.msk [vmem:[%s1] sm:$0xf] %vm34, 0.0
      %36 = vst.msk [vmem:[%s1 + $0x4] sm:$0xf] %vm34, 0.0
      %37 = vst.msk [vmem:[%s2] sm:$0xf] %vm34, 0.0
      %38 = vst.msk [vmem:[%s2 + $0x4] sm:$0xf] %vm34, 0.0
    $region13: #{tpu_custom_call.1} parent=1 // pred_fallthru
      _
    %v39 = vld [vmem:[#allocation2] sm:$0xff]
    %v40 = vld [vmem:[#allocation2 + $0x8] sm:$0xff]
    %v41 = vld [vmem:[%s1] sm:$0xf]
    %v42 = vld [vmem:[%s1 + $0x4] sm:$0xf]
    %v45 = vcombine.high %v39, %v39
    %v46 = vcombine.high %v40, %v40
    %vm49 = vcmask 1043456
    %v50 = vsel %vm49, %v39, 0.0
    %v51 = vsel %vm49, %v45, 0.0
    %v52 = vadd.f32 %v50, %v51
    %53 = vadd.xlane.f32.xlu0 %v52
    %v54 = vpop.xlane.xlu0 %53
    %v55 = vsel %vm49, %v40, 0.0
    %v56 = vsel %vm49, %v46, 0.0
    %v57 = vadd.f32 %v55, %v56
    %58 = vadd.xlane.f32.xlu0 %v57
    %v59 = vpop.xlane.xlu0 %58
    %v60 = vadd.f32 %v41, %v54
    %v61 = vadd.f32 %v42, %v59
    %vm62 = vcmask 3072
    %63 = vst.msk [vmem:[%s1] sm:$0xf] %vm62, %v60
    %64 = vst.msk [vmem:[%s1 + $0x4] sm:$0xf] %vm62, %v61
    %v65 = vld [vmem:[%s2] sm:$0xf]
    %v66 = vld [vmem:[%s2 + $0x4] sm:$0xf]
    %v67 = vmul.f32 %v39, %v39
    %v68 = vmul.f32 %v40, %v40
    %v71 = vcombine.high %v67, %v67
    %v72 = vcombine.high %v68, %v68
    %v75 = vsel %vm49, %v67, 0.0
    %v76 = vsel %vm49, %v71, 0.0
    %v77 = vadd.f32 %v75, %v76
    %78 = vadd.xlane.f32.xlu0 %v77
    %v79 = vpop.xlane.xlu0 %78
    %v80 = vsel %vm49, %v68, 0.0
    %v81 = vsel %vm49, %v72, 0.0
    %v82 = vadd.f32 %v80, %v81
    %83 = vadd.xlane.f32.xlu0 %v82
    %v84 = vpop.xlane.xlu0 %83
    %v85 = vadd.f32 %v65, %v79
    %v86 = vadd.f32 %v66, %v84
    %87 = vst.msk [vmem:[%s2] sm:$0xf] %vm62, %v85
    %88 = vst.msk [vmem:[%s2 + $0x4] sm:$0xf] %vm62, %v86
    // Predicated region
    $region14: #{tpu_custom_call.1} parent=1 // pred_check
      _
    $region15: #{tpu_custom_call.1} parent=1 // pred_check_branch
      %90 = sbr.rel (0) target = $region17
    $region16: #{tpu_custom_call.1} parent=1 // pred_region
      _
    $region17: #{tpu_custom_call.1} parent=1 // pred_fallthru
      _
    // Predicated region
    $region18: #{tpu_custom_call.1} parent=1 // pred_check
      _
    $region19: #{tpu_custom_call.1} parent=1 // pred_check_branch
      %92 = sbr.rel (0) target = $region21
    $region20: #{tpu_custom_call.1} parent=1 // pred_region
      _
    $region21: #{tpu_custom_call.1} parent=1 // pred_fallthru
      _
    // Predicated region
    $region22: #{tpu_custom_call.1} parent=1 // pred_check
      _
    $region23: #{tpu_custom_call.1} parent=1 // pred_check_branch
      %94 = sbr.rel (0) target = $region25
    $region24: #{tpu_custom_call.1} parent=1 // pred_region
      _
    $region25: #{tpu_custom_call.1} parent=1 // pred_fallthru
      _
    // Predicated region
    $region26: #{tpu_custom_call.1} parent=1 // pred_check
      _
    $region27: #{tpu_custom_call.1} parent=1 // pred_check_branch
      %96 = sbr.rel (0) target = $region29
    $region28: #{tpu_custom_call.1} parent=1 // pred_region
      _
    $region29: #{tpu_custom_call.1} parent=1 // pred_fallthru
      _
    %97 = vsyncpa [#allocation3], 1

</llo_original>
